<compile_context>
chip_gen: v7x
topology: tpu7x:2x2x1
jax: 0.10.0
libtpu: 0.0.40
codegen_flags: <defaults>
</compile_context>

<pallas_src>
import functools

import jax
import jax.numpy as jnp
from jax.experimental import pallas as pl
from jax.experimental.pallas import tpu as pltpu


def _vq_kernel(xa_ref, ea_ref, et_ref, q_ref, idx_ref, err_ref):
    """One grid step processes a (D+1, tm) channel-major tile of tokens.

    xa_ref  : (D+1, tm) input tokens (rows 0..D-1) + a constant ones row (row D)
    ea_ref  : (K, D+1)  augmented codebook: [-2*e | ||e||^2]
    et_ref  : (D, K)    codebook transposed (for the gather matmul)
    q_ref   : (D, tm)   quantized tokens, channel-major
    idx_ref : (1, tm)   nearest codebook indices (lane-dense row)
    err_ref : (1,1,1)   per-tile partial sum of squared error
    """
    xa = xa_ref[...]               # (D+1, tm) f32
    ea = ea_ref[...]               # (K, D+1)  f32
    e_t = et_ref[...]              # (D, K)    f32
    K = ea.shape[0]
    D = e_t.shape[0]

    x = xa[:D, :]                  # (D, tm) original tokens

    # Distance proxy: argmin_k ||x - e_k||^2 == argmin_k (||e_k||^2 - 2 e_k.x)
    # (the ||x||^2 term is constant per token and dropped).  Both the -2 scale
    # and the +||e_k||^2 bias are folded into this single matmul.
    dist = jnp.dot(ea, xa, preferred_element_type=jnp.float32)     # (K, tm)

    # argmin over the code (sublane) axis with first-index tie-breaking,
    # done entirely in int32 (no float casts, no (K,tm) iota materialization).
    min_d = jnp.min(dist, axis=0, keepdims=True)                   # (1, tm)
    k_iota = jax.lax.broadcasted_iota(jnp.int32, (K, 1), 0)        # (K, 1)
    cand = jnp.where(dist == min_d, k_iota, jnp.int32(K))          # (K, tm) i32
    idx = jnp.min(cand, axis=0, keepdims=True)                     # (1, tm) i32
    idx_ref[...] = idx

    # Gather nearest codebook rows via one-hot matmul (MXU-friendly gather):
    # q[d, t] = e[idx[t], d]
    onehot = (k_iota == idx).astype(jnp.float32)                   # (K, tm)
    q = jnp.dot(e_t, onehot, preferred_element_type=jnp.float32)   # (D, tm)

    # Forward value of the straight-through estimator is just the quantized
    # tokens (input + (q - input) == q numerically), so store q directly.
    q_ref[...] = q.astype(q_ref.dtype)

    # Per-tile partial squared error for the MSE losses.
    diff = q - x
    err_ref[...] = jnp.sum(diff * diff)[None, None, None]


@functools.partial(jax.jit, static_argnames=("tm",))
def quantize_forward(x_nchw, codebook, tm=32768):
    """JAX/Pallas equivalent of Quantize.forward (forward pass only).

    x_nchw   : (N, C, H, W) float32, C == embed_dim
    codebook : (K, D) float32 codebook (embed.weight)
    Returns (quantize_nchw, embed_idx, embed_loss, commit_loss).
    """
    N, C, H, W = x_nchw.shape
    K, D = codebook.shape
    assert C == D, "input dim doesn't match the dim of codebook!"

    M = N * H * W

    # Tile selection: big tiles amortize the ~0.35us per-grid-step overhead;
    # keep >= 2 tiles when the whole problem would fit one tile so the
    # "parallel" grid axis can still be sharded across v7x's two TensorCores.
    tm = min(tm, M)
    if tm == M and M % 256 == 0:
        tm = M // 2
    # TODO(synk): support M % tm != 0 via padding/masking for non-synthetic shapes.
    assert M % tm == 0, "token count must be a multiple of the token tile size"
    assert tm % 128 == 0 or tm == M, "token tile must be lane-aligned (mult of 128)"
    num_tiles = M // tm

    # NCHW -> channel-major flat (D, M): token axis is last => lane-dense kernel I/O.
    x_t = jnp.transpose(x_nchw, (1, 0, 2, 3)).reshape(D, M).astype(jnp.float32)
    x_aug = jnp.concatenate([x_t, jnp.ones((1, M), jnp.float32)], axis=0)  # (D+1, M)

    e = codebook.astype(jnp.float32)                       # (K, D)
    e2 = jnp.sum(e * e, axis=1, keepdims=True)             # (K, 1)   hoisted
    e_aug = jnp.concatenate([-2.0 * e, e2], axis=1)        # (K, D+1) hoisted
    e_t = e.T                                              # (D, K)   hoisted

    # TODO(synk): for realistic VQ-VAE sizes (K >= 512), add a K-tiling inner
    # loop with a running min/argmin accumulator so VMEM stays bounded.
    q_t, idx_row, err_part = pl.pallas_call(
        _vq_kernel,
        out_shape=(
            jax.ShapeDtypeStruct((D, M), jnp.float32),             # quantized tokens
            jax.ShapeDtypeStruct((1, M), jnp.int32),               # nearest indices
            jax.ShapeDtypeStruct((num_tiles, 1, 1), jnp.float32),  # per-tile sq-err
        ),
        grid_spec=pltpu.PrefetchScalarGridSpec(
            num_scalar_prefetch=0,
            grid=(num_tiles,),
            in_specs=[
                pl.BlockSpec((D + 1, tm), lambda i: (0, i)),  # token tile (+ ones row)
                pl.BlockSpec((K, D + 1), lambda i: (0, 0)),   # augmented codebook
                pl.BlockSpec((D, K), lambda i: (0, 0)),       # codebook^T
            ],
            out_specs=[
                pl.BlockSpec((D, tm), lambda i: (0, i)),
                pl.BlockSpec((1, tm), lambda i: (0, i)),
                pl.BlockSpec((1, 1, 1), lambda i: (i, 0, 0)),
            ],
        ),
        compiler_params=pltpu.CompilerParams(
            dimension_semantics=("parallel",),     # independent tiles: megacore OK
            vmem_limit_bytes=48 * 1024 * 1024,     # fits large tm on v5e/v6e/v7x
        ),
    )(x_aug, e_aug, e_t)

    quantize_nchw = jnp.transpose(q_t.reshape(D, N, H, W), (1, 0, 2, 3))
    embed_idx = idx_row.reshape(N, H, W)
    mse = jnp.sum(err_part) / jnp.float32(N * C * H * W)
    # TODO(synk): forward-only; detach / straight-through gradient semantics
    # (embed_loss vs commit_loss, identity grad through the quantizer) would need
    # a jax.custom_vjp wrapper.
    embed_loss = mse    # F.mse_loss(input.detach(), quantize)
    commit_loss = mse   # F.mse_loss(quantize.detach(), input)
    return quantize_nchw, embed_idx, embed_loss, commit_loss


def _reference_forward(x_nchw, codebook):
    """Pure-JAX reference of the PyTorch forward (sanity check)."""
    N, C, H, W = x_nchw.shape
    D = codebook.shape[1]
    flat = jnp.transpose(x_nchw, (0, 2, 3, 1)).reshape(-1, D)
    dist2 = (jnp.sum(flat**2, -1, keepdims=True)
             - 2.0 * flat @ codebook.T
             + jnp.sum(codebook**2, -1)[None, :])
    idx = jnp.argmin(dist2, axis=-1).astype(jnp.int32)
    q = codebook[idx].reshape(N, H, W, D)
    q = jnp.transpose(q, (0, 3, 1, 2))
    loss = jnp.mean((q - x_nchw) ** 2)
    return q, idx.reshape(N, H, W), loss, loss


if __name__ == "__main__":
    # Small shapes consistent with the module: N=2, C=embed_dim=4, H=W=16,
    # codebook size embed_size=16.  M = 2*16*16 = 512 tokens -> 2 tiles of 256.
    key = jax.random.PRNGKey(0)
    k_x, k_e = jax.random.split(key)

    embed_size, embed_dim = 16, 4
    N, C, H, W = 2, embed_dim, 16, 16

    x = jax.random.normal(k_x, (N, C, H, W), dtype=jnp.float32)
    # nn.Embedding weight with .uniform_(-1, 1), deterministic init in-script.
    codebook = jax.random.uniform(k_e, (embed_size, embed_dim),
                                  dtype=jnp.float32, minval=-1.0, maxval=1.0)

    q, idx, embed_loss, commit_loss = quantize_forward(x, codebook)
    jax.block_until_ready((q, idx, embed_loss, commit_loss))

    # Sanity check against a pure-JAX reference.
    q_ref, idx_ref, loss_ref, _ = _reference_forward(x, codebook)
    assert q.shape == (N, C, H, W) and q.dtype == jnp.float32
    assert idx.shape == (N, H, W) and idx.dtype == jnp.int32
    assert jnp.array_equal(idx, idx_ref)
    assert jnp.allclose(q, q_ref, atol=1e-5, rtol=1e-5)
    assert jnp.allclose(embed_loss, loss_ref, atol=1e-5, rtol=1e-5)
    assert jnp.allclose(commit_loss, loss_ref, atol=1e-5, rtol=1e-5)

    print("KERNEL_OK")
</pallas_src>

<mosaic_0001>
module attributes {stable_mosaic.version = 11 : i64} {
  func.func @_vq_kernel(%arg0: i32, %arg1: memref<5x256xf32, #tpu.memory_space<vmem>>, %arg2: memref<16x5xf32, #tpu.memory_space<vmem>>, %arg3: memref<4x16xf32, #tpu.memory_space<vmem>>, %arg4: memref<4x256xf32, #tpu.memory_space<vmem>>, %arg5: memref<1x256xi32, #tpu.memory_space<vmem>>, %arg6: memref<1x1x1xf32, #tpu.memory_space<vmem>>) attributes {dimension_semantics = [#tpu.dimension_semantics<parallel>], iteration_bounds = array<i64: 2>, scalar_prefetch = 0 : i64, scratch_operands = 0 : i64, tpu.core_type = #tpu.core_type<tc>, window_params = [{transform_indices = @transform_0, window_bounds = array<i64: 5, 256>}, {pipeline_mode = #tpu.pipeline_mode<synchronous>, transform_indices = @transform_1, window_bounds = array<i64: 16, 5>}, {pipeline_mode = #tpu.pipeline_mode<synchronous>, transform_indices = @transform_2, window_bounds = array<i64: 4, 16>}, {transform_indices = @transform_3, window_bounds = array<i64: 4, 256>}, {transform_indices = @transform_4, window_bounds = array<i64: 1, 256>}, {transform_indices = @transform_5, window_bounds = array<i64: 1, 1, 1>}]} {
    %c0 = arith.constant 0 : index
    %c0_0 = arith.constant 0 : index
    %0 = vector.load %arg1[%c0, %c0_0] : memref<5x256xf32, #tpu.memory_space<vmem>>, vector<5x256xf32>
    %c0_1 = arith.constant 0 : index
    %c0_2 = arith.constant 0 : index
    %1 = vector.load %arg2[%c0_1, %c0_2] : memref<16x5xf32, #tpu.memory_space<vmem>>, vector<16x5xf32>
    %c0_3 = arith.constant 0 : index
    %c0_4 = arith.constant 0 : index
    %2 = vector.load %arg3[%c0_3, %c0_4] : memref<4x16xf32, #tpu.memory_space<vmem>>, vector<4x16xf32>
    %3 = vector.extract_strided_slice %0 {offsets = [0, 0], sizes = [4, 256], strides = [1, 1]} : vector<5x256xf32> to vector<4x256xf32>
    %cst = arith.constant dense<0.000000e+00> : vector<16x256xf32>
    %4 = tpu.matmul %1, %0, %cst {dimension_numbers = #tpu.dot_dimension_numbers<[1], [0], [0], [1], [0, 0, 1, 1], [], []>} : vector<16x5xf32>, vector<5x256xf32>, vector<16x256xf32> -> vector<16x256xf32>
    %cst_5 = arith.constant dense<0x7F800000> : vector<256xf32>
    %5 = vector.multi_reduction <minimumf>, %4, %cst_5 [0] : vector<16x256xf32> to vector<256xf32>
    %6 = vector.shape_cast %5 : vector<256xf32> to vector<1x256xf32>
    %7 = tpu.iota {dimensions = array<i32: 0>} : vector<16x1xi32>
    %8 = vector.broadcast %6 : vector<1x256xf32> to vector<16x256xf32>
    %9 = arith.cmpf oeq, %4, %8 : vector<16x256xf32>
    %c16_i32 = arith.constant 16 : i32
    %10 = vector.shape_cast %7 : vector<16x1xi32> to vector<16x1xi32>
    %11 = vector.broadcast %10 : vector<16x1xi32> to vector<16x256xi32>
    %12 = vector.broadcast %c16_i32 : i32 to vector<16x256xi32>
    %13 = arith.select %9, %11, %12 : vector<16x256xi1>, vector<16x256xi32>
    %cst_6 = arith.constant dense<2147483647> : vector<256xi32>
    %14 = vector.multi_reduction <minsi>, %13, %cst_6 [0] : vector<16x256xi32> to vector<256xi32>
    %15 = vector.shape_cast %14 : vector<256xi32> to vector<1x256xi32>
    %c0_7 = arith.constant 0 : index
    %c0_8 = arith.constant 0 : index
    %16 = vector.load %arg5[%c0_7, %c0_8] : memref<1x256xi32, #tpu.memory_space<vmem>>, vector<1x256xi32>
    tpu.vector_store %arg5[%c0_7, %c0_8], %15 {strides = array<i32>} : memref<1x256xi32, #tpu.memory_space<vmem>>, vector<1x256xi32>,
    %17 = vector.broadcast %7 : vector<16x1xi32> to vector<16x256xi32>
    %18 = vector.broadcast %15 : vector<1x256xi32> to vector<16x256xi32>
    %19 = arith.cmpi eq, %17, %18 : vector<16x256xi32>
    %20 = arith.extui %19 : vector<16x256xi1> to vector<16x256xi32>
    %21 = arith.sitofp %20 : vector<16x256xi32> to vector<16x256xf32>
    %cst_9 = arith.constant dense<0.000000e+00> : vector<4x256xf32>
    %22 = tpu.matmul %2, %21, %cst_9 {dimension_numbers = #tpu.dot_dimension_numbers<[1], [0], [0], [1], [0, 0, 1, 1], [], []>} : vector<4x16xf32>, vector<16x256xf32>, vector<4x256xf32> -> vector<4x256xf32>
    %c0_10 = arith.constant 0 : index
    %c0_11 = arith.constant 0 : index
    %23 = vector.load %arg4[%c0_10, %c0_11] : memref<4x256xf32, #tpu.memory_space<vmem>>, vector<4x256xf32>
    tpu.vector_store %arg4[%c0_10, %c0_11], %22 {strides = array<i32>} : memref<4x256xf32, #tpu.memory_space<vmem>>, vector<4x256xf32>,
    %24 = arith.subf %22, %3 : vector<4x256xf32>
    %25 = arith.mulf %24, %24 : vector<4x256xf32>
    %26 = vector.shape_cast %25 : vector<4x256xf32> to vector<1x4x256xf32>
    %cst_12 = arith.constant dense<0.000000e+00> : vector<1xf32>
    %27 = vector.multi_reduction <add>, %26, %cst_12 [1, 2] : vector<1x4x256xf32> to vector<1xf32>
    %28 = vector.shape_cast %27 : vector<1xf32> to vector<1x1x1xf32>
    %29 = vector.extract %28[0, 0, 0] : f32 from vector<1x1x1xf32>
    %30 = vector.broadcast %29 : f32 to vector<1x1x1xf32>
    %c0_13 = arith.constant 0 : index
    %c0_14 = arith.constant 0 : index
    %c0_15 = arith.constant 0 : index
    %31 = vector.load %arg6[%c0_13, %c0_14, %c0_15] : memref<1x1x1xf32, #tpu.memory_space<vmem>>, vector<1x1x1xf32>
    tpu.vector_store %arg6[%c0_13, %c0_14, %c0_15], %30 {strides = array<i32>} : memref<1x1x1xf32, #tpu.memory_space<vmem>>, vector<1x1x1xf32>,
    return
  }
  func.func @transform_0(%arg0: i32) -> (i32, i32) {
    %c0_i32 = arith.constant 0 : i32
    %c0_i32_0 = arith.constant 0 : i32
    return %c0_i32, %arg0 : i32, i32
  }
  func.func @transform_1(%arg0: i32) -> (i32, i32) {
    %c0_i32 = arith.constant 0 : i32
    %c0_i32_0 = arith.constant 0 : i32
    %c0_i32_1 = arith.constant 0 : i32
    return %c0_i32, %c0_i32_0 : i32, i32
  }
  func.func @transform_2(%arg0: i32) -> (i32, i32) {
    %c0_i32 = arith.constant 0 : i32
    %c0_i32_0 = arith.constant 0 : i32
    %c0_i32_1 = arith.constant 0 : i32
    return %c0_i32, %c0_i32_0 : i32, i32
  }
  func.func @transform_3(%arg0: i32) -> (i32, i32) {
    %c0_i32 = arith.constant 0 : i32
    %c0_i32_0 = arith.constant 0 : i32
    return %c0_i32, %arg0 : i32, i32
  }
  func.func @transform_4(%arg0: i32) -> (i32, i32) {
    %c0_i32 = arith.constant 0 : i32
    %c0_i32_0 = arith.constant 0 : i32
    return %c0_i32, %arg0 : i32, i32
  }
  func.func @transform_5(%arg0: i32) -> (i32, i32, i32) {
    %c0_i32 = arith.constant 0 : i32
    %c0_i32_0 = arith.constant 0 : i32
    %c0_i32_1 = arith.constant 0 : i32
    return %arg0, %c0_i32, %c0_i32_0 : i32, i32, i32
  }
}

</mosaic_0001>

<llo_original>
// kernel: quantize_forward.1
$region0: #{quantize_forward.1}
  #allocation0 [shape = 'u32[]', space=smem, size = 0x4, offset = 0x4, fixed_abs, tag = 'smem constant byte address 0x4 - core index']
  #allocation1 [shape = 'u32[144,128]{1,0:T(1,128)}', space=vmem, size = 0x12000, scoped, tag = 'internal scratch']
  %s0 = inlined_call_operand.vmem [shape: f32[5,512], index: 0, kind: input, shape index: {}]
  %s1 = inlined_call_operand.vmem [shape: f32[16,5], index: 1, kind: input, shape index: {}]
  %s2 = inlined_call_operand.vmem [shape: f32[4,16], index: 2, kind: input, shape index: {}]
  %s3 = inlined_call_operand.vmem [shape: f32[4,512], index: 3, kind: output, shape index: {0}]
  %s4 = inlined_call_operand.vmem [shape: s32[1,512], index: 4, kind: output, shape index: {1}]
  %s5 = inlined_call_operand.vmem [shape: f32[2,1,1], index: 5, kind: output, shape index: {2}]
  %6 = xla_tuple %s3, %s4, %s5
  %s7 = sld [smem:[#allocation0]]
  $region61: #{quantize_forward.1} parent=0
    _
  %s9 = ssub.s32 1, %s7
  %s10 = scalar_select 0, %s9, %s7
  loop: start=0, step=1, limit=4
  $region2: #{quantize_forward.1} parent=0 // loop_pre_header
    _
  $region3: #{quantize_forward.1} parent=0 // loop_header
    %s12 = sphi 0, %s16
    %p13 = scmp.ge.s32.totalorder %s12, 4
    %s22 = sphi 0, %s24
    %s25 = sphi 0, %s22
    %s26 = sphi 0, %s25
    %s42 = sphi 0, %s26
    %s46 = sphi 0, %s46
    %s48 = sphi 0, %s46
    %s49 = sphi 0, %s48
    %s63 = sphi 0, %s49
    %s67 = sphi 0, %s67
    %s69 = sphi 0, %s67
    %s70 = sphi 0, %s69
    %s84 = sphi 0, %s70
    %s90 = sphi 0, %s92
    %s93 = sphi 0, %s90
    %s94 = sphi 0, %s93
    %s110 = sphi 0, %s94
    %s116 = sphi 0, %s118
    %s119 = sphi 0, %s116
    %s120 = sphi 0, %s119
    %s136 = sphi 0, %s120
    %s142 = sphi 0, %s144
    %s145 = sphi 0, %s142
    %s146 = sphi 0, %s145
    %s162 = sphi 0, %s146
  $region4: #{quantize_forward.1} parent=0 // loop_header_branch
    %15 = sbr.rel (%p13) target = $region8
  $region5: #{quantize_forward.1} parent=0 // loop_body
    %s17 = ssub.s32 %s12, 1
    %s18 = ssub.s32 %s12, 2
    %s19 = sadd.s32 %s12, 1
    %s20 = ssub.s32 %s12, %s19
    %p21 = scmp.eq.s32.totalorder %s20, 0
    %s23 = sadd.s32 %s22, 1
    %s24 = scalar_select %p21, %s22, %s23
    %p27 = pneg %p21
    %p28 = scmp.eq.s32.totalorder %s12, 1
    %p29 = por %p27, %p28
    %p30 = scmp.ne.s32.totalorder %s22, %s25
    %p31 = scmp.eq.s32.totalorder %s12, 0
    %p32 = por %p30, %p31
    %p33 = scmp.ne.s32.totalorder %s22, %s25
    %p34 = scmp.eq.s32.totalorder %s17, 1
    %p35 = por %p33, %p34
    %p36 = scmp.ne.s32.totalorder %s25, %s26
    %p37 = scmp.eq.s32.totalorder %s17, 0
    %p38 = por %p36, %p37
    %p39 = scmp.ne.s32.totalorder %s25, %s26
    %p40 = scmp.eq.s32.totalorder %s18, 1
    %p41 = por %p39, %p40
    %p43 = scmp.ne.s32.totalorder %s26, %s42
    %p44 = scmp.eq.s32.totalorder %s18, 0
    %p45 = por %p43, %p44
    %s47 = sadd.s32 %s46, 1
    %p50 = scmp.eq.s32.totalorder %s12, 1
    %p51 = scmp.ne.s32.totalorder %s46, %s48
    %p52 = scmp.eq.s32.totalorder %s12, 0
    %p53 = por %p51, %p52
    %p54 = scmp.ne.s32.totalorder %s46, %s48
    %p55 = scmp.eq.s32.totalorder %s17, 1
    %p56 = por %p54, %p55
    %p57 = scmp.ne.s32.totalorder %s48, %s49
    %p58 = scmp.eq.s32.totalorder %s17, 0
    %p59 = por %p57, %p58
    %p60 = scmp.ne.s32.totalorder %s48, %s49
    %p61 = scmp.eq.s32.totalorder %s18, 1
    %p62 = por %p60, %p61
    %p64 = scmp.ne.s32.totalorder %s49, %s63
    %p65 = scmp.eq.s32.totalorder %s18, 0
    %p66 = por %p64, %p65
    %s68 = sadd.s32 %s67, 1
    %p71 = scmp.eq.s32.totalorder %s12, 1
    %p72 = scmp.ne.s32.totalorder %s67, %s69
    %p73 = scmp.eq.s32.totalorder %s12, 0
    %p74 = por %p72, %p73
    %p75 = scmp.ne.s32.totalorder %s67, %s69
    %p76 = scmp.eq.s32.totalorder %s17, 1
    %p77 = por %p75, %p76
    %p78 = scmp.ne.s32.totalorder %s69, %s70
    %p79 = scmp.eq.s32.totalorder %s17, 0
    %p80 = por %p78, %p79
    %p81 = scmp.ne.s32.totalorder %s69, %s70
    %p82 = scmp.eq.s32.totalorder %s18, 1
    %p83 = por %p81, %p82
    %p85 = scmp.ne.s32.totalorder %s70, %s84
    %p86 = scmp.eq.s32.totalorder %s18, 0
    %p87 = por %p85, %p86
    %s88 = ssub.s32 %s12, %s19
    %p89 = scmp.eq.s32.totalorder %s88, 0
    %s91 = sadd.s32 %s90, 1
    %s92 = scalar_select %p89, %s90, %s91
    %p95 = pneg %p89
    %p96 = scmp.eq.s32.totalorder %s12, 1
    %p97 = por %p95, %p96
    %p98 = scmp.ne.s32.totalorder %s90, %s93
    %p99 = scmp.eq.s32.totalorder %s12, 0
    %p100 = por %p98, %p99
    %p101 = scmp.ne.s32.totalorder %s90, %s93
    %p102 = scmp.eq.s32.totalorder %s17, 1
    %p103 = por %p101, %p102
    %p104 = scmp.ne.s32.totalorder %s93, %s94
    %p105 = scmp.eq.s32.totalorder %s17, 0
    %p106 = por %p104, %p105
    %p107 = scmp.ne.s32.totalorder %s93, %s94
    %p108 = scmp.eq.s32.totalorder %s18, 1
    %p109 = por %p107, %p108
    %p111 = scmp.ne.s32.totalorder %s94, %s110
    %p112 = scmp.eq.s32.totalorder %s18, 0
    %p113 = por %p111, %p112
    %s114 = ssub.s32 %s12, %s19
    %p115 = scmp.eq.s32.totalorder %s114, 0
    %s117 = sadd.s32 %s116, 1
    %s118 = scalar_select %p115, %s116, %s117
    %p121 = pneg %p115
    %p122 = scmp.eq.s32.totalorder %s12, 1
    %p123 = por %p121, %p122
    %p124 = scmp.ne.s32.totalorder %s116, %s119
    %p125 = scmp.eq.s32.totalorder %s12, 0
    %p126 = por %p124, %p125
    %p127 = scmp.ne.s32.totalorder %s116, %s119
    %p128 = scmp.eq.s32.totalorder %s17, 1
    %p129 = por %p127, %p128
    %p130 = scmp.ne.s32.totalorder %s119, %s120
    %p131 = scmp.eq.s32.totalorder %s17, 0
    %p132 = por %p130, %p131
    %p133 = scmp.ne.s32.totalorder %s119, %s120
    %p134 = scmp.eq.s32.totalorder %s18, 1
    %p135 = por %p133, %p134
    %p137 = scmp.ne.s32.totalorder %s120, %s136
    %p138 = scmp.eq.s32.totalorder %s18, 0
    %p139 = por %p137, %p138
    %s140 = ssub.s32 %s12, %s19
    %p141 = scmp.eq.s32.totalorder %s140, 0
    %s143 = sadd.s32 %s142, 1
    %s144 = scalar_select %p141, %s142, %s143
    %p147 = pneg %p141
    %p148 = scmp.eq.s32.totalorder %s12, 1
    %p149 = por %p147, %p148
    %p150 = scmp.ne.s32.totalorder %s142, %s145
    %p151 = scmp.eq.s32.totalorder %s12, 0
    %p152 = por %p150, %p151
    %p153 = scmp.ne.s32.totalorder %s142, %s145
    %p154 = scmp.eq.s32.totalorder %s17, 1
    %p155 = por %p153, %p154
    %p156 = scmp.ne.s32.totalorder %s145, %s146
    %p157 = scmp.eq.s32.totalorder %s17, 0
    %p158 = por %p156, %p157
    %p159 = scmp.ne.s32.totalorder %s145, %s146
    %p160 = scmp.eq.s32.totalorder %s18, 1
    %p161 = por %p159, %p160
    %p163 = scmp.ne.s32.totalorder %s146, %s162
    %p164 = scmp.eq.s32.totalorder %s18, 0
    %p165 = por %p163, %p164
    %p166 = scmp.le.s32.totalorder 1, %s12
    %p167 = scmp.lt.s32.totalorder %s12, 3
    %p168 = pnand %p166, %p167
    %p169 = pneg %p168
    // Predicated region
    $region9: #{quantize_forward.1} parent=5 // pred_check
      _
    $region10: #{quantize_forward.1} parent=5 // pred_check_branch
      %171 = sbr.rel (%p168) target = $region12
    $region11: #{quantize_forward.1} parent=5 // pred_region
      %s172 = ssub.s32 %s12, 1
      // Predicated region
      $region13: #{quantize_forward.1} parent=11 // pred_check
        %p173 = pneg %p59
      $region14: #{quantize_forward.1} parent=11 // pred_check_branch
        %175 = sbr.rel (%p173) target = $region16
      $region15: #{quantize_forward.1} parent=11 // pred_region
        _
      $region16: #{quantize_forward.1} parent=11 // pred_fallthru
        _
      // Predicated region
      $region17: #{quantize_forward.1} parent=11 // pred_check
        %p176 = pneg %p80
      $region18: #{quantize_forward.1} parent=11 // pred_check_branch
        %178 = sbr.rel (%p176) target = $region20
      $region19: #{quantize_forward.1} parent=11 // pred_region
        _
      $region20: #{quantize_forward.1} parent=11 // pred_fallthru
        _
    $region12: #{quantize_forward.1} parent=5 // pred_fallthru
      _
    %p179 = scmp.lt.s32.totalorder %s12, 2
    // Predicated region
    $region21: #{quantize_forward.1} parent=5 // pred_check
      %p180 = pneg %p179
    $region22: #{quantize_forward.1} parent=5 // pred_check_branch
      %182 = sbr.rel (%p180) target = $region24
    $region23: #{quantize_forward.1} parent=5 // pred_region
      // Predicated region
      $region25: #{quantize_forward.1} parent=23 // pred_check
        %p183 = pneg %p32
      $region26: #{quantize_forward.1} parent=23 // pred_check_branch
        %185 = sbr.rel (%p183) target = $region28
      $region27: #{quantize_forward.1} parent=23 // pred_region
        %s186 = smul.u32 2, %s12
        %p187 = scmp.lt.s32.totalorder %s186, 3
        %s188 = scalar_select %p187, %s186, 3
        %s189 = smul.addr %s188, 8
        %s190 = scalar_lea.vmem %s0, %s189
        %s191 = smul.u32 2, %s12
      $region28: #{quantize_forward.1} parent=23 // pred_fallthru
        _
    $region24: #{quantize_forward.1} parent=5 // pred_fallthru
      _
    %p192 = scmp.le.s32.totalorder 1, %s12
    %p193 = scmp.lt.s32.totalorder %s12, 3
    %p194 = pnand %p192, %p193
    %p195 = pneg %p194
    // Predicated region
    $region29: #{quantize_forward.1} parent=5 // pred_check
      _
    $region30: #{quantize_forward.1} parent=5 // pred_check_branch
      %197 = sbr.rel (%p194) target = $region32
    $region31: #{quantize_forward.1} parent=5 // pred_region
      %s198 = ssub.s32 %s12, 1
      %s199 = smul.u32 2, %s17
      %p200 = scmp.lt.s32.totalorder %s199, 3
      %s201 = scalar_select %p200, %s199, 3
      %s202 = smul.addr %s201, 8
      %s203 = scalar_lea.vmem %s0, %s202
      %p204 = pneg %p38
      %p205 = pneg %p35
      %p206 = pneg %p59
      %p207 = pneg %p56
      %p208 = pneg %p80
      %p209 = pneg %p77
      %p210 = pneg %p106
      %p211 = pneg %p103
      %s212 = smul.u32 2, %s17
      %p213 = scmp.lt.s32.totalorder %s212, 3
      %s214 = scalar_select %p213, %s212, 3
      %s215 = smul.addr %s214, 4
      %s216 = scalar_lea.vmem %s3, %s215
      %p217 = pneg %p132
      %p218 = pneg %p129
      %s219 = smul.u32 2, %s17
      %p220 = scmp.lt.s32.totalorder %s219, 3
      %s221 = scalar_select %p220, %s219, 3
      %s222 = scalar_lea.vmem %s4, %s221
      %p223 = pneg %p158
      %p224 = pneg %p155
      %p225 = scmp.lt.s32.totalorder %s17, 1
      %s226 = scalar_select %p225, %s17, 1
      %s227 = scalar_lea.vmem %s5, %s226
      %s228 = smul.u32 2, %s17
      %p229 = scmp.lt.s32.totalorder %s228, 3
      %s230 = scalar_select %p229, %s228, 3
      %s231 = smul.addr %s230, 8
      %s232 = scalar_lea.vmem %s0, %s231
      %s233 = smul.u32 2, %s17
      %s234 = smul.u32 2, %s17
      %p235 = scmp.lt.s32.totalorder %s234, 3
      %s236 = scalar_select %p235, %s234, 3
      %s237 = smul.addr %s236, 4
      %s238 = scalar_lea.vmem %s3, %s237
      %s239 = smul.u32 2, %s17
      %s240 = smul.u32 2, %s17
      %p241 = scmp.lt.s32.totalorder %s240, 3
      %s242 = scalar_select %p241, %s240, 3
      %s243 = scalar_lea.vmem %s4, %s242
      %s244 = smul.u32 2, %s17
      %p245 = scmp.lt.s32.totalorder %s17, 1
      %s246 = scalar_select %p245, %s17, 1
      %s247 = scalar_lea.vmem %s5, %s246
      %v248 = vld [vmem:[%s232] sm:$0x1f]
      %v249 = vld [vmem:[%s232 + $0x8] sm:$0x1f]
      %v250 = vld [vmem:[%s1] sm:$0xff]
      %v251 = vld [vmem:[%s1 + $0x8] sm:$0xff]
      %v252 = vld [vmem:[%s2] sm:$0xf]
      %vm253 = vcmask 39936
      %v255 = vsel %vm253, %v250, 0
      %v258 = vsel %vm253, %v251, 0
      %vm260 = vcmask 1044480
      %v262 = vsel %vm260, %v248, 0
      %v265 = vsel %vm260, %v249, 0
      %267 = vmatprep.subr.mxu0 %v265
      %268 = vmatpush1.msra.mxu0 %v262
      %269 = vmatprep.subr.mxu0 0.0
      %270 = vmatpush1.msra.mxu0 0.0
      %271 = vmatprep.subr.mxu0 0.0
      %272 = vmatpush1.msra.mxu0 0.0
      %273 = vmatprep.subr.mxu0 0.0
      %274 = vmatpush1.msra.mxu0 0.0
      %275 = vmatprep.subr.mxu0 0.0
      %276 = vmatpush1.msra.mxu0 0.0
      %277 = vmatprep.subr.mxu0 0.0
      %278 = vmatpush1.msra.mxu0 0.0
      %279 = vmatprep.subr.mxu0 0.0
      %280 = vmatpush1.msra.mxu0 0.0
      %281 = vmatprep.subr.mxu0 0.0
      %282 = vmatpush1.msra.mxu0 0.0
      %283 = vmatprep.subr.mxu0 0.0
      %284 = vmatpush1.msra.mxu0 0.0
      %285 = vmatprep.subr.mxu0 0.0
      %286 = vmatpush1.msra.mxu0 0.0
      %287 = vmatprep.subr.mxu0 0.0
      %288 = vmatpush1.msra.mxu0 0.0
      %289 = vmatprep.subr.mxu0 0.0
      %290 = vmatpush1.msra.mxu0 0.0
      %291 = vmatprep.subr.mxu0 0.0
      %292 = vmatpush1.msra.mxu0 0.0
      %293 = vmatprep.subr.mxu0 0.0
      %294 = vmatpush1.msra.mxu0 0.0
      %295 = vmatprep.subr.mxu0 0.0
      %296 = vmatpush1.msra.mxu0 0.0
      %297 = vmatprep.subr.mxu0 0.0
      %298 = vmatpush1.msra.mxu0 0.0
      %299 = vmatprep.subr.mxu0 0.0
      %300 = vmatpush1.msra.mxu0 0.0
      %301 = vmatprep.subr.mxu0 0.0
      %302 = vmatpush1.msra.mxu0 0.0
      %303 = vmatprep.subr.mxu0 0.0
      %304 = vmatpush1.msra.mxu0 0.0
      %305 = vmatprep.subr.mxu0 0.0
      %306 = vmatpush1.msra.mxu0 0.0
      %307 = vmatprep.subr.mxu0 0.0
      %308 = vmatpush1.msra.mxu0 0.0
      %309 = vmatprep.subr.mxu0 0.0
      %310 = vmatpush1.msra.mxu0 0.0
      %311 = vmatprep.subr.mxu0 0.0
      %312 = vmatpush1.msra.mxu0 0.0
      %313 = vmatprep.subr.mxu0 0.0
      %314 = vmatpush1.msra.mxu0 0.0
      %315 = vmatprep.subr.mxu0 0.0
      %316 = vmatpush1.msra.mxu0 0.0
      %317 = vmatprep.subr.mxu0 0.0
      %318 = vmatpush1.msra.mxu0 0.0
      %319 = vmatprep.subr.mxu0 0.0
      %320 = vmatpush1.msra.mxu0 0.0
      %321 = vmatprep.subr.mxu0 0.0
      %322 = vmatpush1.msra.mxu0 0.0
      %323 = vmatprep.subr.mxu0 0.0
      %324 = vmatpush1.msra.mxu0 0.0
      %325 = vmatprep.subr.mxu0 0.0
      %326 = vmatpush1.msra.mxu0 0.0
      %327 = vmatprep.subr.mxu0 0.0
      %328 = vmatpush1.msra.mxu0 0.0
      %329 = vmatprep.subr.mxu0 0.0
      %330 = vmatpush1.msra.mxu0 0.0
      %331 = vmatprep.mubr.f32.mxu0 0.0
      %332 = vmatmul.mubr.f32.gmra.mrb[0].mxu0 %v255
      %v333 = vpop.f32.mrb[0].mxu0
      %v334 = vadd.f32 0.0, %v333
      %v335 = vpop.f32.mrb[0].mxu0
      %v336 = vadd.f32 0.0, %v335
      %337 = vmatprep.mubr.f32.mxu0 0.0
      %338 = vmatmul.mubr.f32.gmra.mrb[0].mxu0 %v258
      %v339 = vpop.f32.mrb[0].mxu0
      %v340 = vadd.f32 0.0, %v339
      %v341 = vpop.f32.mrb[0].mxu0
      %v342 = vadd.f32 0.0, %v341
      %343 = vdwg.mxu0
      %v344 = vmin.f32 %v334, %v340
      %v345 = vrot.slane %v344, 4
      %v346 = vmin.f32 %v344, %v345
      %v347 = vrot.slane %v346, 2
      %v348 = vmin.f32 %v346, %v347
      %v349 = vrot.slane %v348, 1
      %v350 = vmin.f32 %v348, %v349
      %v351 = vmin.f32 %v336, %v342
      %v352 = vrot.slane %v351, 4
      %v353 = vmin.f32 %v351, %v352
      %v354 = vrot.slane %v353, 2
      %v355 = vmin.f32 %v353, %v354
      %v356 = vrot.slane %v355, 1
      %v357 = vmin.f32 %v355, %v356
      %v358 = vlaneseq
      %v359 = vshrl.u32 %v358, 7
      %v360 = vadd.s32 %v359, 8
      %vm361 = vcmp.eq.f32.partialorder %v334, %v350
      %vm362 = vcmp.eq.f32.partialorder %v336, %v357
      %vm363 = vcmp.eq.f32.partialorder %v340, %v350
      %vm364 = vcmp.eq.f32.partialorder %v342, %v357
      %v365 = vsel %vm361, %v359, 16
      %v366 = vsel %vm362, %v359, 16
      %v367 = vsel %vm363, %v360, 16
      %v368 = vsel %vm364, %v360, 16
      %vm369 = vcmp.lt.s32.totalorder %v365, %v367
      %v370 = vsel %vm369, %v365, %v367
      %v371 = vrot.slane %v370, 4
      %vm372 = vcmp.lt.s32.totalorder %v370, %v371
      %v373 = vsel %vm372, %v370, %v371
      %v374 = vrot.slane %v373, 2
      %vm375 = vcmp.lt.s32.totalorder %v373, %v374
      %v376 = vsel %vm375, %v373, %v374
      %v377 = vrot.slane %v376, 1
      %vm378 = vcmp.lt.s32.totalorder %v376, %v377
      %v379 = vsel %vm378, %v376, %v377
      %vm380 = vcmp.lt.s32.totalorder %v366, %v368
      %v381 = vsel %vm380, %v366, %v368
      %v382 = vrot.slane %v381, 4
      %vm383 = vcmp.lt.s32.totalorder %v381, %v382
      %v384 = vsel %vm383, %v381, %v382
      %v385 = vrot.slane %v384, 2
      %vm386 = vcmp.lt.s32.totalorder %v384, %v385
      %v387 = vsel %vm386, %v384, %v385
      %v388 = vrot.slane %v387, 1
      %vm389 = vcmp.lt.s32.totalorder %v387, %v388
      %v390 = vsel %vm389, %v387, %v388
      %v391 = vcombine.low %v379, %v390
      %v393 = vunpack.c.l.s4 1966171168
      %v394 = vunpack.c.0.s8 %v393
      %v395 = vlaneseq
      %v396 = vshrl.u32 %v395, 7
      %v397 = vsub.s32 %v394, %v396
      %v398 = vrot.slane %v391, %v397
      %v400 = vunpack.c.l.s4 1966171168
      %v401 = vunpack.c.0.s8 %v400
      %v402 = vlaneseq
      %v403 = vshrl.u32 %v402, 7
      %v404 = vsub.s32 %v401, %v403
      %v405 = vrot.slane %v398, %v404
      %v406 = vlaneseq
      %vm407 = vcmp.ge.s32.totalorder %v406, 0
      %vm408 = vcmp.lt.s32.totalorder %v406, 256
      %vm409 = vmand %vm407, %vm408
      %410 = vst.msk [vmem:[%s243] sm:$0x3] %vm409, %v405
      %vm411 = vcmp.eq.s32.totalorder %v359, %v379
      %vm412 = vcmp.eq.s32.totalorder %v359, %v390
      %vm413 = vcmp.eq.s32.totalorder %v360, %v379
      %vm414 = vcmp.eq.s32.totalorder %v360, %v390
      %v415 = vsel %vm411, 1, 0
      %v416 = vsel %vm412, 1, 0
      %v417 = vsel %vm413, 1, 0
      %v418 = vsel %vm414, 1, 0
      %v419 = vcvt.s32.f32 %v415
      %v420 = vcvt.s32.f32 %v416
      %v421 = vcvt.s32.f32 %v417
      %v422 = vcvt.s32.f32 %v418
      %vm423 = vcmask 130048
      %v425 = vsel %vm423, %v252, 0
      %427 = vmatprep.subr.mxu0 %v420
      %428 = vmatpush1.msra.mxu0 %v419
      %429 = vmatprep.subr.mxu0 %v422
      %430 = vmatpush1.msra.mxu0 %v421
      %431 = vmatprep.subr.mxu0 0.0
      %432 = vmatpush1.msra.mxu0 0.0
      %433 = vmatprep.subr.mxu0 0.0
      %434 = vmatpush1.msra.mxu0 0.0
      %435 = vmatprep.subr.mxu0 0.0
      %436 = vmatpush1.msra.mxu0 0.0
      %437 = vmatprep.subr.mxu0 0.0
      %438 = vmatpush1.msra.mxu0 0.0
      %439 = vmatprep.subr.mxu0 0.0
      %440 = vmatpush1.msra.mxu0 0.0
      %441 = vmatprep.subr.mxu0 0.0
      %442 = vmatpush1.msra.mxu0 0.0
      %443 = vmatprep.subr.mxu0 0.0
      %444 = vmatpush1.msra.mxu0 0.0
      %445 = vmatprep.subr.mxu0 0.0
      %446 = vmatpush1.msra.mxu0 0.0
      %447 = vmatprep.subr.mxu0 0.0
      %448 = vmatpush1.msra.mxu0 0.0
      %449 = vmatprep.subr.mxu0 0.0
      %450 = vmatpush1.msra.mxu0 0.0
      %451 = vmatprep.subr.mxu0 0.0
      %452 = vmatpush1.msra.mxu0 0.0
      %453 = vmatprep.subr.mxu0 0.0
      %454 = vmatpush1.msra.mxu0 0.0
      %455 = vmatprep.subr.mxu0 0.0
      %456 = vmatpush1.msra.mxu0 0.0
      %457 = vmatprep.subr.mxu0 0.0
      %458 = vmatpush1.msra.mxu0 0.0
      %459 = vmatprep.subr.mxu0 0.0
      %460 = vmatpush1.msra.mxu0 0.0
      %461 = vmatprep.subr.mxu0 0.0
      %462 = vmatpush1.msra.mxu0 0.0
      %463 = vmatprep.subr.mxu0 0.0
      %464 = vmatpush1.msra.mxu0 0.0
      %465 = vmatprep.subr.mxu0 0.0
      %466 = vmatpush1.msra.mxu0 0.0
      %467 = vmatprep.subr.mxu0 0.0
      %468 = vmatpush1.msra.mxu0 0.0
      %469 = vmatprep.subr.mxu0 0.0
      %470 = vmatpush1.msra.mxu0 0.0
      %471 = vmatprep.subr.mxu0 0.0
      %472 = vmatpush1.msra.mxu0 0.0
      %473 = vmatprep.subr.mxu0 0.0
      %474 = vmatpush1.msra.mxu0 0.0
      %475 = vmatprep.subr.mxu0 0.0
      %476 = vmatpush1.msra.mxu0 0.0
      %477 = vmatprep.subr.mxu0 0.0
      %478 = vmatpush1.msra.mxu0 0.0
      %479 = vmatprep.subr.mxu0 0.0
      %480 = vmatpush1.msra.mxu0 0.0
      %481 = vmatprep.subr.mxu0 0.0
      %482 = vmatpush1.msra.mxu0 0.0
      %483 = vmatprep.subr.mxu0 0.0
      %484 = vmatpush1.msra.mxu0 0.0
      %485 = vmatprep.subr.mxu0 0.0
      %486 = vmatpush1.msra.mxu0 0.0
      %487 = vmatprep.subr.mxu0 0.0
      %488 = vmatpush1.msra.mxu0 0.0
      %489 = vmatprep.subr.mxu0 0.0
      %490 = vmatpush1.msra.mxu0 0.0
      %491 = vmatprep.mubr.f32.mxu0 0.0
      %492 = vmatmul.mubr.f32.gmra.mrb[0].mxu0 %v425
      %v493 = vpop.f32.mrb[0].mxu0
      %v494 = vadd.f32 0.0, %v493
      %v495 = vpop.f32.mrb[0].mxu0
      %v496 = vadd.f32 0.0, %v495
      %497 = vdwg.mxu0
      %v500 = vcombine.low %v494, %v496
      %502 = vst [vmem:[%s238] sm:$0xff] %v500
      %v503 = vsub.f32 %v494, %v248
      %v504 = vsub.f32 %v496, %v249
      %v505 = vmul.f32 %v503, %v503
      %v506 = vmul.f32 %v504, %v504
      %vm507 = vcmask 1043456
      %v508 = vsel %vm507, %v505, 0.0
      %v509 = vsel %vm507, %v506, 0.0
      %v510 = vadd.f32 %v508, %v509
      %511 = vadd.xlane.f32.xlu0 %v510
      %v512 = vpop.xlane.xlu0 %511
      %v513 = vrot.slane %v512, 4
      %v514 = vadd.f32 %v512, %v513
      %v515 = vrot.slane %v514, 2
      %v516 = vadd.f32 %v514, %v515
      %v517 = vrot.slane %v516, 1
      %v518 = vadd.f32 %v516, %v517
      %s519 = vtos %v518
      %v520 = vstv %s519
      %vm521 = vcmask 0
      %522 = vst.msk [vmem:[%s247] sm:$0x1] %vm521, %v520
      %s523 = smul.u32 2, %s17
      %p524 = scmp.lt.s32.totalorder %s523, 3
      %s525 = scalar_select %p524, %s523, 3
      %s526 = smul.addr %s525, 4
      %s527 = scalar_lea.vmem %s3, %s526
      %s528 = smul.u32 2, %s17
      %p529 = scmp.lt.s32.totalorder %s528, 3
      %s530 = scalar_select %p529, %s528, 3
      %s531 = scalar_lea.vmem %s4, %s530
      %p532 = scmp.lt.s32.totalorder %s17, 1
      %s533 = scalar_select %p532, %s17, 1
      %s534 = scalar_lea.vmem %s5, %s533
      // Predicated region
      $region33: #{quantize_forward.1} parent=31 // pred_check
        %p535 = pneg %p103
      $region34: #{quantize_forward.1} parent=31 // pred_check_branch
        %537 = sbr.rel (%p535) target = $region36
      $region35: #{quantize_forward.1} parent=31 // pred_region
        %s538 = smul.u32 2, %s17
      $region36: #{quantize_forward.1} parent=31 // pred_fallthru
        _
      // Predicated region
      $region37: #{quantize_forward.1} parent=31 // pred_check
        %p539 = pneg %p129
      $region38: #{quantize_forward.1} parent=31 // pred_check_branch
        %541 = sbr.rel (%p539) target = $region40
      $region39: #{quantize_forward.1} parent=31 // pred_region
        %s542 = smul.u32 2, %s17
      $region40: #{quantize_forward.1} parent=31 // pred_fallthru
        _
      // Predicated region
      $region41: #{quantize_forward.1} parent=31 // pred_check
        %p543 = pneg %p155
      $region42: #{quantize_forward.1} parent=31 // pred_check_branch
        %545 = sbr.rel (%p543) target = $region44
      $region43: #{quantize_forward.1} parent=31 // pred_region
        _
      $region44: #{quantize_forward.1} parent=31 // pred_fallthru
        _
    $region32: #{quantize_forward.1} parent=5 // pred_fallthru
      _
    %p546 = scmp.le.s32.totalorder 2, %s12
    // Predicated region
    $region45: #{quantize_forward.1} parent=5 // pred_check
      %p547 = pneg %p546
    $region46: #{quantize_forward.1} parent=5 // pred_check_branch
      %549 = sbr.rel (%p547) target = $region48
    $region47: #{quantize_forward.1} parent=5 // pred_region
      %s550 = ssub.s32 %s12, 2
      // Predicated region
      $region49: #{quantize_forward.1} parent=47 // pred_check
        %p551 = pneg %p109
      $region50: #{quantize_forward.1} parent=47 // pred_check_branch
        %553 = sbr.rel (%p551) target = $region52
      $region51: #{quantize_forward.1} parent=47 // pred_region
        %s554 = smul.u32 2, %s18
        %p555 = scmp.lt.s32.totalorder %s554, 3
        %s556 = scalar_select %p555, %s554, 3
        %s557 = smul.addr %s556, 4
        %s558 = scalar_lea.vmem %s3, %s557
      $region52: #{quantize_forward.1} parent=47 // pred_fallthru
        _
      // Predicated region
      $region53: #{quantize_forward.1} parent=47 // pred_check
        %p559 = pneg %p135
      $region54: #{quantize_forward.1} parent=47 // pred_check_branch
        %561 = sbr.rel (%p559) target = $region56
      $region55: #{quantize_forward.1} parent=47 // pred_region
        %s562 = smul.u32 2, %s18
        %p563 = scmp.lt.s32.totalorder %s562, 3
        %s564 = scalar_select %p563, %s562, 3
        %s565 = scalar_lea.vmem %s4, %s564
      $region56: #{quantize_forward.1} parent=47 // pred_fallthru
        _
      // Predicated region
      $region57: #{quantize_forward.1} parent=47 // pred_check
        %p566 = pneg %p161
      $region58: #{quantize_forward.1} parent=47 // pred_check_branch
        %568 = sbr.rel (%p566) target = $region60
      $region59: #{quantize_forward.1} parent=47 // pred_region
        %p569 = scmp.lt.s32.totalorder %s18, 1
        %s570 = scalar_select %p569, %s18, 1
        %s571 = scalar_lea.vmem %s5, %s570
      $region60: #{quantize_forward.1} parent=47 // pred_fallthru
        _
    $region48: #{quantize_forward.1} parent=5 // pred_fallthru
      _
  $region6: #{quantize_forward.1} parent=0 // loop_footer
    %s16 = sadd.s32 1, %s12
  $region7: #{quantize_forward.1} parent=0 // loop_footer_branch
    %11 = sbr.rel target = $region3
  $region8: #{quantize_forward.1} parent=0 // loop_exit
    _

</llo_original>
